<compile_context>
chip_gen: v7x
topology: tpu7x:2x2x1
jax: 0.10.0
libtpu: 0.0.40
codegen_flags: <defaults>
</compile_context>

<pallas_src>
import functools

import jax
import jax.numpy as jnp
from jax.experimental import pallas as pl
from jax.experimental.pallas import tpu as pltpu


def _round_up(n, m):
    return ((n + m - 1) // m) * m


def _vmem_buf_bytes(rows, cols, dtype):
    """Approximate VMEM footprint of a (rows, cols) buffer after layout padding
    to (sublane, 128) tiles for the given dtype."""
    itemsize = jnp.dtype(dtype).itemsize
    sublane = {4: 8, 2: 16, 1: 32}.get(itemsize, 8)
    return _round_up(max(rows, 1), sublane) * _round_up(max(cols, 1), 128) * itemsize


def _lora_qkv_kernel(x_ref, wqkv_ref, bqkv_ref, wa_ref, wb_ref, out_ref):
    """One (tm, C) token tile -> (tm, 3C) fused qkv + LoRA q/v updates."""
    # Per-tile cast to the compute dtype happens in VMEM (VPU work hidden under
    # the MXU) instead of as a separate wrapper-side HBM pass.
    x = x_ref[...].astype(wqkv_ref.dtype)                      # (tm, C)

    # Base qkv projection on the MXU, f32 accumulation.
    qkv = jnp.dot(x, wqkv_ref[...], preferred_element_type=jnp.float32)  # (tm, 3C)

    # Fused LoRA: one down-projection to 2r, one block-structured up-projection
    # to 3C (scale already folded in; the k block of wb is zero).
    ab = jnp.dot(x, wa_ref[...], preferred_element_type=jnp.float32)     # (tm, 2r)
    lora = jnp.dot(ab.astype(wb_ref.dtype), wb_ref[...],
                   preferred_element_type=jnp.float32)                   # (tm, 3C)

    # Single lane-dense store: no concatenate, no partial-lane slice writes.
    out_ref[...] = (qkv + bqkv_ref[...] + lora).astype(out_ref.dtype)


def prepare_lora_qkv_params(params, scale=None, compute_dtype=jnp.bfloat16):
    """One-time host-side weight prep: transpose, fuse LoRA, fold scale, cast.

    Done OUTSIDE the per-call forward so no transposes are re-emitted per step.
    params:
      wqkv (3C, C), bqkv (3C,), wa_q (r, C), wb_q (C, r), wa_v (r, C), wb_v (C, r)

    compute_dtype defaults to bfloat16: the MXU is bf16-native on v5e/v6e/v7x
    (f32 weights force multi-pass MXU emulation) and bf16 halves resident-weight
    VMEM and DMA.  Accumulation is always f32.
    """
    wqkv = jnp.asarray(params["wqkv"], jnp.float32)
    bqkv = jnp.asarray(params["bqkv"], jnp.float32)
    wa_q = jnp.asarray(params["wa_q"], jnp.float32)
    wb_q = jnp.asarray(params["wb_q"], jnp.float32)
    wa_v = jnp.asarray(params["wa_v"], jnp.float32)
    wb_v = jnp.asarray(params["wb_v"], jnp.float32)

    C = wqkv.shape[1]
    r = wa_q.shape[0]
    s = jnp.float32(1.0 if scale is None else scale)

    # Fused LoRA down-projection: (C, 2r) = [Wa_q^T | Wa_v^T]
    wa_fused = jnp.concatenate([wa_q.T, wa_v.T], axis=1)

    # Block-structured up-projection (2r, 3C) with scale folded in; the middle
    # (k) third stays zero so a single full-width add applies both deltas.
    wb_fused = jnp.zeros((2 * r, 3 * C), jnp.float32)
    wb_fused = wb_fused.at[:r, :C].set(wb_q.T * s)          # q delta block
    wb_fused = wb_fused.at[r:, 2 * C:].set(wb_v.T * s)      # v delta block

    return {
        "wqkv_t": wqkv.T.astype(compute_dtype),              # (C, 3C)
        "bqkv": bqkv.reshape(1, 3 * C).astype(jnp.float32),  # (1, 3C), f32 bias
        "wa": wa_fused.astype(compute_dtype),                # (C, 2r)
        "wb": wb_fused.astype(compute_dtype),                # (2r, 3C)
    }


@functools.partial(jax.jit, static_argnames=("tm",))
def lora_qkv_forward(x, prep, *, tm=512):
    """x: (B, H, W, C).  prep: output of prepare_lora_qkv_params.

    Returns (B, H, W, 3C) in x.dtype.
    """
    B, H, W, C = x.shape
    M = B * H * W
    three_c = prep["wqkv_t"].shape[1]
    assert three_c == 3 * C
    r2 = prep["wa"].shape[1]                      # 2 * lora_rank
    compute_dtype = prep["wqkv_t"].dtype
    out_dtype = x.dtype

    # ---- token tiling + shape/generation-aware per-TC VMEM budget -----------
    assert tm % 16 == 0, "tm must be a multiple of 16 (bf16 sublane packing)"
    tm_eff = max(16, min(tm, _round_up(M, 16)))

    try:
        vmem_cap = pltpu.get_tpu_info().vmem_capacity_bytes   # per-TensorCore
    except Exception:
        vmem_cap = 64 * 1024 * 1024                           # v7x per-TC floor
    vmem_budget = max(vmem_cap - 8 * 1024 * 1024, 16 * 1024 * 1024)

    # Resident weights are single-buffered; x / out tiles double-buffer.
    weight_bytes = (_vmem_buf_bytes(C, 3 * C, compute_dtype)
                    + _vmem_buf_bytes(1, 3 * C, jnp.float32)
                    + _vmem_buf_bytes(C, r2, compute_dtype)
                    + _vmem_buf_bytes(r2, 3 * C, compute_dtype))

    def _needed(t):
        return (weight_bytes
                + 2 * _vmem_buf_bytes(t, C, x.dtype)
                + 2 * _vmem_buf_bytes(t, 3 * C, out_dtype))

    while _needed(tm_eff) > vmem_budget and tm_eff > 16:
        tm_eff = max(16, _round_up(tm_eff // 2, 16))

    vmem_limit = int(min(vmem_budget, _needed(tm_eff) + 2 * 1024 * 1024))

    grid_m = pl.cdiv(M, tm_eff)   # ragged last block handled by Pallas masking

    # Metadata-only reshape; NO pad, NO cast in the wrapper (no extra HBM pass).
    x2d = x.reshape(M, C)

    flops = 2 * M * C * (3 * C) + 2 * M * C * r2 + 2 * M * r2 * (3 * C)
    bytes_accessed = (M * C * jnp.dtype(x.dtype).itemsize
                      + M * 3 * C * jnp.dtype(out_dtype).itemsize
                      + (C * 3 * C + C * r2 + r2 * 3 * C)
                      * jnp.dtype(compute_dtype).itemsize
                      + 3 * C * 4)

    resident = dict(pipeline_mode=pl.Buffered(1))   # constant index_map operands

    out2d = pl.pallas_call(
        _lora_qkv_kernel,
        out_shape=jax.ShapeDtypeStruct((M, 3 * C), out_dtype),
        grid_spec=pltpu.PrefetchScalarGridSpec(
            num_scalar_prefetch=0,
            grid=(grid_m,),
            in_specs=[
                pl.BlockSpec((tm_eff, C), lambda i: (i, 0)),              # x tile
                pl.BlockSpec((C, 3 * C), lambda i: (0, 0), **resident),   # Wqkv^T
                pl.BlockSpec((1, 3 * C), lambda i: (0, 0), **resident),   # bias
                pl.BlockSpec((C, r2), lambda i: (0, 0), **resident),      # LoRA down
                pl.BlockSpec((r2, 3 * C), lambda i: (0, 0), **resident),  # LoRA up
            ],
            out_specs=pl.BlockSpec((tm_eff, 3 * C), lambda i: (i, 0)),
        ),
        compiler_params=pltpu.CompilerParams(
            dimension_semantics=("parallel",),
            vmem_limit_bytes=vmem_limit,
        ),
        cost_estimate=pl.CostEstimate(
            flops=flops, transcendentals=0, bytes_accessed=bytes_accessed),
    )(x2d, prep["wqkv_t"], prep["bqkv"], prep["wa"], prep["wb"])

    return out2d.reshape(B, H, W, 3 * C)


def _reference(x, params, scale=None):
    """Plain-JAX reference mirroring the PyTorch forward."""
    C = x.shape[-1]
    qkv = x @ params["wqkv"].T + params["bqkv"]
    new_q = (x @ params["wa_q"].T) @ params["wb_q"].T
    new_v = (x @ params["wa_v"].T) @ params["wb_v"].T
    if scale is not None:
        new_q = new_q * scale
        new_v = new_v * scale
    qkv = qkv.at[..., :C].add(new_q)
    qkv = qkv.at[..., 2 * C:].add(new_v)
    return qkv


if __name__ == "__main__":
    # Small shapes consistent with the SAM image-encoder forward:
    # x: (B, H, W, C), qkv: Linear(C, 3C, bias=True), LoRA rank r.
    B, Hs, Ws, C, r = 2, 8, 8, 32, 4

    key = jax.random.PRNGKey(0)
    k_x, k_wqkv, k_bqkv, k_aq, k_bq, k_av, k_bv, k_xr = jax.random.split(key, 8)

    x = jax.random.normal(k_x, (B, Hs, Ws, C), dtype=jnp.float32)
    params = {
        # nn.Linear(dim, 3*dim, bias=True): weight (3C, C), bias (3C,)
        "wqkv": jax.random.normal(k_wqkv, (3 * C, C), jnp.float32) * 0.05,
        "bqkv": jax.random.normal(k_bqkv, (3 * C,), jnp.float32) * 0.05,
        # LoRA linears (no bias): a: (r, C), b: (C, r)
        "wa_q": jax.random.normal(k_aq, (r, C), jnp.float32) * 0.05,
        "wb_q": jax.random.normal(k_bq, (C, r), jnp.float32) * 0.05,
        "wa_v": jax.random.normal(k_av, (r, C), jnp.float32) * 0.05,
        "wb_v": jax.random.normal(k_bv, (C, r), jnp.float32) * 0.05,
    }
    scale = 0.5
    ref = _reference(x, params, scale)

    # ---- f32 compute path: tight check against the reference. ----
    prep_f32 = prepare_lora_qkv_params(params, scale, compute_dtype=jnp.float32)
    out = jax.block_until_ready(lora_qkv_forward(x, prep_f32))
    assert out.shape == (B, Hs, Ws, 3 * C)
    assert jnp.allclose(out, ref, atol=1e-4, rtol=1e-4), "f32 mismatch vs reference"

    # ---- scale=None path (defaults to 1.0 folded into the weights). ----
    prep_ns = prepare_lora_qkv_params(params, None, compute_dtype=jnp.float32)
    out_ns = jax.block_until_ready(lora_qkv_forward(x, prep_ns))
    ref_ns = _reference(x, params, None)
    assert jnp.allclose(out_ns, ref_ns, atol=1e-4, rtol=1e-4), "scale=None mismatch"

    # ---- default bf16 compute path (production config), f32 accumulate. ----
    prep_bf16 = prepare_lora_qkv_params(params, scale)   # bf16 default
    out_bf16 = jax.block_until_ready(lora_qkv_forward(x, prep_bf16))
    assert jnp.allclose(out_bf16.astype(jnp.float32), ref, atol=5e-2, rtol=5e-2), \
        "bf16 mismatch vs reference"

    # ---- ragged token count (M not a multiple of the tile): no wrapper pad,
    # Pallas masks the out-of-bounds rows of the last block. ----
    xr = jax.random.normal(k_xr, (1, 5, 5, C), dtype=jnp.float32)
    out_r = jax.block_until_ready(lora_qkv_forward(xr, prep_f32))
    ref_r = _reference(xr, params, scale)
    assert out_r.shape == (1, 5, 5, 3 * C)
    assert jnp.allclose(out_r, ref_r, atol=1e-4, rtol=1e-4), "ragged-M mismatch"

    print("KERNEL_OK")
</pallas_src>

<mosaic_0001>
module attributes {stable_mosaic.version = 11 : i64} {
  func.func @_lora_qkv_kernel(%arg0: i32, %arg1: memref<128x32xf32, #tpu.memory_space<vmem>>, %arg2: memref<32x96xf32, #tpu.memory_space<vmem>>, %arg3: memref<1x96xf32, #tpu.memory_space<vmem>>, %arg4: memref<32x8xf32, #tpu.memory_space<vmem>>, %arg5: memref<8x96xf32, #tpu.memory_space<vmem>>, %arg6: memref<128x96xf32, #tpu.memory_space<vmem>>) attributes {dimension_semantics = [#tpu.dimension_semantics<parallel>], iteration_bounds = array<i64: 1>, scalar_prefetch = 0 : i64, scratch_operands = 0 : i64, tpu.core_type = #tpu.core_type<tc>, window_params = [{transform_indices = @transform_0, window_bounds = array<i64: 128, 32>}, {pipeline_mode = #tpu.pipeline_mode<synchronous>, transform_indices = @transform_1, window_bounds = array<i64: 32, 96>}, {pipeline_mode = #tpu.pipeline_mode<synchronous>, transform_indices = @transform_2, window_bounds = array<i64: 1, 96>}, {pipeline_mode = #tpu.pipeline_mode<synchronous>, transform_indices = @transform_3, window_bounds = array<i64: 32, 8>}, {pipeline_mode = #tpu.pipeline_mode<synchronous>, transform_indices = @transform_4, window_bounds = array<i64: 8, 96>}, {transform_indices = @transform_5, window_bounds = array<i64: 128, 96>}]} {
    %c0 = arith.constant 0 : index
    %c0_0 = arith.constant 0 : index
    %0 = vector.load %arg1[%c0, %c0_0] : memref<128x32xf32, #tpu.memory_space<vmem>>, vector<128x32xf32>
    %c0_1 = arith.constant 0 : index
    %c0_2 = arith.constant 0 : index
    %1 = vector.load %arg2[%c0_1, %c0_2] : memref<32x96xf32, #tpu.memory_space<vmem>>, vector<32x96xf32>
    %cst = arith.constant dense<0.000000e+00> : vector<128x96xf32>
    %2 = tpu.matmul %0, %1, %cst {dimension_numbers = #tpu.dot_dimension_numbers<[1], [0], [0], [1], [0, 0, 1, 1], [], []>} : vector<128x32xf32>, vector<32x96xf32>, vector<128x96xf32> -> vector<128x96xf32>
    %c0_3 = arith.constant 0 : index
    %c0_4 = arith.constant 0 : index
    %3 = vector.load %arg4[%c0_3, %c0_4] : memref<32x8xf32, #tpu.memory_space<vmem>>, vector<32x8xf32>
    %cst_5 = arith.constant dense<0.000000e+00> : vector<128x8xf32>
    %4 = tpu.matmul %0, %3, %cst_5 {dimension_numbers = #tpu.dot_dimension_numbers<[1], [0], [0], [1], [0, 0, 1, 1], [], []>} : vector<128x32xf32>, vector<32x8xf32>, vector<128x8xf32> -> vector<128x8xf32>
    %c0_6 = arith.constant 0 : index
    %c0_7 = arith.constant 0 : index
    %5 = vector.load %arg5[%c0_6, %c0_7] : memref<8x96xf32, #tpu.memory_space<vmem>>, vector<8x96xf32>
    %cst_8 = arith.constant dense<0.000000e+00> : vector<128x96xf32>
    %6 = tpu.matmul %4, %5, %cst_8 {dimension_numbers = #tpu.dot_dimension_numbers<[1], [0], [0], [1], [0, 0, 1, 1], [], []>} : vector<128x8xf32>, vector<8x96xf32>, vector<128x96xf32> -> vector<128x96xf32>
    %c0_9 = arith.constant 0 : index
    %c0_10 = arith.constant 0 : index
    %7 = vector.load %arg3[%c0_9, %c0_10] : memref<1x96xf32, #tpu.memory_space<vmem>>, vector<1x96xf32>
    %8 = vector.broadcast %7 : vector<1x96xf32> to vector<128x96xf32>
    %9 = arith.addf %2, %8 : vector<128x96xf32>
    %10 = arith.addf %9, %6 : vector<128x96xf32>
    %c0_11 = arith.constant 0 : index
    %c0_12 = arith.constant 0 : index
    %11 = vector.load %arg6[%c0_11, %c0_12] : memref<128x96xf32, #tpu.memory_space<vmem>>, vector<128x96xf32>
    tpu.vector_store %arg6[%c0_11, %c0_12], %10 {strides = array<i32>} : memref<128x96xf32, #tpu.memory_space<vmem>>, vector<128x96xf32>,
    return
  }
  func.func @transform_0(%arg0: i32) -> (i32, i32) {
    %c0_i32 = arith.constant 0 : i32
    %c0_i32_0 = arith.constant 0 : i32
    return %arg0, %c0_i32 : i32, i32
  }
  func.func @transform_1(%arg0: i32) -> (i32, i32) {
    %c0_i32 = arith.constant 0 : i32
    %c0_i32_0 = arith.constant 0 : i32
    %c0_i32_1 = arith.constant 0 : i32
    return %c0_i32, %c0_i32_0 : i32, i32
  }
  func.func @transform_2(%arg0: i32) -> (i32, i32) {
    %c0_i32 = arith.constant 0 : i32
    %c0_i32_0 = arith.constant 0 : i32
    %c0_i32_1 = arith.constant 0 : i32
    return %c0_i32, %c0_i32_0 : i32, i32
  }
  func.func @transform_3(%arg0: i32) -> (i32, i32) {
    %c0_i32 = arith.constant 0 : i32
    %c0_i32_0 = arith.constant 0 : i32
    %c0_i32_1 = arith.constant 0 : i32
    return %c0_i32, %c0_i32_0 : i32, i32
  }
  func.func @transform_4(%arg0: i32) -> (i32, i32) {
    %c0_i32 = arith.constant 0 : i32
    %c0_i32_0 = arith.constant 0 : i32
    %c0_i32_1 = arith.constant 0 : i32
    return %c0_i32, %c0_i32_0 : i32, i32
  }
  func.func @transform_5(%arg0: i32) -> (i32, i32) {
    %c0_i32 = arith.constant 0 : i32
    %c0_i32_0 = arith.constant 0 : i32
    return %arg0, %c0_i32 : i32, i32
  }
}

</mosaic_0001>

<llo_original>
// kernel: lora_qkv_forward.1
$region0: #{lora_qkv_forward.1}
  #allocation0 [shape = 'u32[]', space=smem, size = 0x4, offset = 0x4, fixed_abs, tag = 'smem constant byte address 0x4 - core index']
  #allocation1 [shape = 'u32[144,128]{1,0:T(1,128)}', space=vmem, size = 0x12000, scoped, tag = 'internal scratch']
  %s0 = inlined_call_operand.hbm [shape: f32[128,32], index: 0, kind: input, shape index: {}]
  %s1 = inlined_call_operand.vmem [shape: f32[32,96], index: 1, kind: input, shape index: {}]
  %s2 = inlined_call_operand.vmem [shape: f32[1,96], index: 2, kind: input, shape index: {}]
  %s3 = inlined_call_operand.vmem [shape: f32[32,8], index: 3, kind: input, shape index: {}]
  %s4 = inlined_call_operand.vmem [shape: f32[8,96], index: 4, kind: input, shape index: {}]
  %s5 = inlined_call_operand.hbm [shape: f32[128,96], index: 5, kind: output, shape index: {}]
  %s6 = sld [smem:[#allocation0]]
  $region34: #{lora_qkv_forward.1} parent=0
    _
  %s8 = ssub.s32 1, %s6
  %s9 = scalar_select 0, %s8, %s6
  $region1: #{lora_qkv_forward.1} parent=0
    #allocation2 [shape = 'u8[65536]{0}', space=vmem, size = 0x10000, scoped, tag = 'input window, operand 0, single buffered']
    #allocation3 [shape = 's32[1]{0}', space=sflag, size = 0x4, scoped, tag = 'scoped memory for lora_qkv_forward.1']
    #allocation4 [shape = 's32[1]{0}', space=sflag, size = 0x4, scoped, tag = 'scoped memory for lora_qkv_forward.1']
    #allocation5 [shape = 'u8[65536]{0}', space=vmem, size = 0x10000, scoped, tag = 'output window, operand 0, single buffered']
    %10 = vsyncpa [#allocation3], 0
    %11 = vsyncpa [#allocation4], 0
    // Predicated region
    $region2: #{lora_qkv_forward.1} parent=1 // pred_check
      _
    $region3: #{lora_qkv_forward.1} parent=1 // pred_check_branch
      %13 = sbr.rel (0) target = $region5
    $region4: #{lora_qkv_forward.1} parent=1 // pred_region
      %s15 = ssub.s32 2048, 2048
      %16 = vsyncadd [#allocation3], %s15
      %s17 = sshll.u32 [#allocation2], 4
      %s18 = int_to_ptr.vmem [resolvable:$true] %s17
      %23 = dma.hbm_to_vmem [thread:$0]  %s0, 2048, %s18, [#allocation3], 128, 128, 8
    $region5: #{lora_qkv_forward.1} parent=1 // pred_fallthru
      _
    // Predicated region
    $region6: #{lora_qkv_forward.1} parent=1 // pred_check
      _
    $region7: #{lora_qkv_forward.1} parent=1 // pred_check_branch
      %25 = sbr.rel (0) target = $region9
    $region8: #{lora_qkv_forward.1} parent=1 // pred_region
      _
    $region9: #{lora_qkv_forward.1} parent=1 // pred_fallthru
      _
    // Predicated region
    $region10: #{lora_qkv_forward.1} parent=1 // pred_check
      _
    $region11: #{lora_qkv_forward.1} parent=1 // pred_check_branch
      %27 = sbr.rel (0) target = $region13
    $region12: #{lora_qkv_forward.1} parent=1 // pred_region
      _
    $region13: #{lora_qkv_forward.1} parent=1 // pred_fallthru
      _
    // Predicated region
    $region14: #{lora_qkv_forward.1} parent=1 // pred_check
      _
    $region15: #{lora_qkv_forward.1} parent=1 // pred_check_branch
      %29 = sbr.rel (0) target = $region17
    $region16: #{lora_qkv_forward.1} parent=1 // pred_region
      _
    $region17: #{lora_qkv_forward.1} parent=1 // pred_fallthru
      _
    // Predicated region
    $region18: #{lora_qkv_forward.1} parent=1 // pred_check
      _
    $region19: #{lora_qkv_forward.1} parent=1 // pred_check_branch
      %31 = sbr.rel (0) target = $region21
    $region20: #{lora_qkv_forward.1} parent=1 // pred_region
      _
    $region21: #{lora_qkv_forward.1} parent=1 // pred_fallthru
      _
    // Predicated region
    $region22: #{lora_qkv_forward.1} parent=1 // pred_check
      _
    $region23: #{lora_qkv_forward.1} parent=1 // pred_check_branch
      %33 = sbr.rel (0) target = $region25
    $region24: #{lora_qkv_forward.1} parent=1 // pred_region
      %34 = dma.done [#allocation3], 2048
    $region25: #{lora_qkv_forward.1} parent=1 // pred_fallthru
      _
    %v35 = vld [vmem:[#allocation2] sm:$0xff]
    %v36 = vld [vmem:[#allocation2 + $0x8] sm:$0xff]
    %v37 = vld [vmem:[#allocation2 + $0x10] sm:$0xff]
    %v38 = vld [vmem:[#allocation2 + $0x18] sm:$0xff]
    %v39 = vld [vmem:[#allocation2 + $0x20] sm:$0xff]
    %v40 = vld [vmem:[#allocation2 + $0x28] sm:$0xff]
    %v41 = vld [vmem:[#allocation2 + $0x30] sm:$0xff]
    %v42 = vld [vmem:[#allocation2 + $0x38] sm:$0xff]
    %v43 = vld [vmem:[#allocation2 + $0x40] sm:$0xff]
    %v44 = vld [vmem:[#allocation2 + $0x48] sm:$0xff]
    %v45 = vld [vmem:[#allocation2 + $0x50] sm:$0xff]
    %v46 = vld [vmem:[#allocation2 + $0x58] sm:$0xff]
    %v47 = vld [vmem:[#allocation2 + $0x60] sm:$0xff]
    %v48 = vld [vmem:[#allocation2 + $0x68] sm:$0xff]
    %v49 = vld [vmem:[#allocation2 + $0x70] sm:$0xff]
    %v50 = vld [vmem:[#allocation2 + $0x78] sm:$0xff]
    %v51 = vld [vmem:[%s1] sm:$0xff]
    %v52 = vld [vmem:[%s1 + $0x8] sm:$0xff]
    %v53 = vld [vmem:[%s1 + $0x10] sm:$0xff]
    %v54 = vld [vmem:[%s1 + $0x18] sm:$0xff]
    %v55 = vld [vmem:[%s3] sm:$0xff]
    %v56 = vld [vmem:[%s3 + $0x8] sm:$0xff]
    %v57 = vld [vmem:[%s3 + $0x10] sm:$0xff]
    %v58 = vld [vmem:[%s3 + $0x18] sm:$0xff]
    %vm59 = vcmask 261120
    %v61 = vsel %vm59, %v35, 0
    %v64 = vsel %vm59, %v36, 0
    %v67 = vsel %vm59, %v37, 0
    %v70 = vsel %vm59, %v38, 0
    %v73 = vsel %vm59, %v39, 0
    %v76 = vsel %vm59, %v40, 0
    %v79 = vsel %vm59, %v41, 0
    %v82 = vsel %vm59, %v42, 0
    %v85 = vsel %vm59, %v43, 0
    %v88 = vsel %vm59, %v44, 0
    %v91 = vsel %vm59, %v45, 0
    %v94 = vsel %vm59, %v46, 0
    %v97 = vsel %vm59, %v47, 0
    %v100 = vsel %vm59, %v48, 0
    %v103 = vsel %vm59, %v49, 0
    %v106 = vsel %vm59, %v50, 0
    %108 = vmatprep.subr.mxu0 0.0
    %109 = vmatpush1.msra.mxu0 %v55
    %110 = vmatprep.subr.mxu0 0.0
    %111 = vmatpush1.msra.mxu0 %v56
    %112 = vmatprep.subr.mxu0 0.0
    %113 = vmatpush1.msra.mxu0 %v57
    %114 = vmatprep.subr.mxu0 0.0
    %115 = vmatpush1.msra.mxu0 %v58
    %116 = vmatprep.subr.mxu0 0.0
    %117 = vmatpush1.msra.mxu0 0.0
    %118 = vmatprep.subr.mxu0 0.0
    %119 = vmatpush1.msra.mxu0 0.0
    %120 = vmatprep.subr.mxu0 0.0
    %121 = vmatpush1.msra.mxu0 0.0
    %122 = vmatprep.subr.mxu0 0.0
    %123 = vmatpush1.msra.mxu0 0.0
    %124 = vmatprep.subr.mxu0 0.0
    %125 = vmatpush1.msra.mxu0 0.0
    %126 = vmatprep.subr.mxu0 0.0
    %127 = vmatpush1.msra.mxu0 0.0
    %128 = vmatprep.subr.mxu0 0.0
    %129 = vmatpush1.msra.mxu0 0.0
    %130 = vmatprep.subr.mxu0 0.0
    %131 = vmatpush1.msra.mxu0 0.0
    %132 = vmatprep.subr.mxu0 0.0
    %133 = vmatpush1.msra.mxu0 0.0
    %134 = vmatprep.subr.mxu0 0.0
    %135 = vmatpush1.msra.mxu0 0.0
    %136 = vmatprep.subr.mxu0 0.0
    %137 = vmatpush1.msra.mxu0 0.0
    %138 = vmatprep.subr.mxu0 0.0
    %139 = vmatpush1.msra.mxu0 0.0
    %140 = vmatprep.subr.mxu0 0.0
    %141 = vmatpush1.msra.mxu0 0.0
    %142 = vmatprep.subr.mxu0 0.0
    %143 = vmatpush1.msra.mxu0 0.0
    %144 = vmatprep.subr.mxu0 0.0
    %145 = vmatpush1.msra.mxu0 0.0
    %146 = vmatprep.subr.mxu0 0.0
    %147 = vmatpush1.msra.mxu0 0.0
    %148 = vmatprep.subr.mxu0 0.0
    %149 = vmatpush1.msra.mxu0 0.0
    %150 = vmatprep.subr.mxu0 0.0
    %151 = vmatpush1.msra.mxu0 0.0
    %152 = vmatprep.subr.mxu0 0.0
    %153 = vmatpush1.msra.mxu0 0.0
    %154 = vmatprep.subr.mxu0 0.0
    %155 = vmatpush1.msra.mxu0 0.0
    %156 = vmatprep.subr.mxu0 0.0
    %157 = vmatpush1.msra.mxu0 0.0
    %158 = vmatprep.subr.mxu0 0.0
    %159 = vmatpush1.msra.mxu0 0.0
    %160 = vmatprep.subr.mxu0 0.0
    %161 = vmatpush1.msra.mxu0 0.0
    %162 = vmatprep.subr.mxu0 0.0
    %163 = vmatpush1.msra.mxu0 0.0
    %164 = vmatprep.subr.mxu0 0.0
    %165 = vmatpush1.msra.mxu0 0.0
    %166 = vmatprep.subr.mxu0 0.0
    %167 = vmatpush1.msra.mxu0 0.0
    %168 = vmatprep.subr.mxu0 0.0
    %169 = vmatpush1.msra.mxu0 0.0
    %170 = vmatprep.subr.mxu0 0.0
    %171 = vmatpush1.msra.mxu0 0.0
    %172 = vmatprep.mubr.f32.mxu0 0.0
    %173 = vmatmul.mubr.f32.gmra.mrb[0].mxu0 %v61
    %v174 = vpop.f32.mrb[0].mxu0
    %v175 = vadd.f32 0.0, %v174
    %v176 = vpop.f32.mrb[0].mxu0
    %177 = vmatprep.mubr.f32.mxu0 0.0
    %178 = vmatmul.mubr.f32.gmra.mrb[0].mxu0 %v64
    %v179 = vpop.f32.mrb[0].mxu0
    %v180 = vadd.f32 0.0, %v179
    %v181 = vpop.f32.mrb[0].mxu0
    %182 = vmatprep.mubr.f32.mxu0 0.0
    %183 = vmatmul.mubr.f32.gmra.mrb[0].mxu0 %v67
    %v184 = vpop.f32.mrb[0].mxu0
    %v185 = vadd.f32 0.0, %v184
    %v186 = vpop.f32.mrb[0].mxu0
    %187 = vmatprep.mubr.f32.mxu0 0.0
    %188 = vmatmul.mubr.f32.gmra.mrb[0].mxu0 %v70
    %v189 = vpop.f32.mrb[0].mxu0
    %v190 = vadd.f32 0.0, %v189
    %v191 = vpop.f32.mrb[0].mxu0
    %192 = vmatprep.mubr.f32.mxu0 0.0
    %193 = vmatmul.mubr.f32.gmra.mrb[0].mxu0 %v73
    %v194 = vpop.f32.mrb[0].mxu0
    %v195 = vadd.f32 0.0, %v194
    %v196 = vpop.f32.mrb[0].mxu0
    %197 = vmatprep.mubr.f32.mxu0 0.0
    %198 = vmatmul.mubr.f32.gmra.mrb[0].mxu0 %v76
    %v199 = vpop.f32.mrb[0].mxu0
    %v200 = vadd.f32 0.0, %v199
    %v201 = vpop.f32.mrb[0].mxu0
    %202 = vmatprep.mubr.f32.mxu0 0.0
    %203 = vmatmul.mubr.f32.gmra.mrb[0].mxu0 %v79
    %v204 = vpop.f32.mrb[0].mxu0
    %v205 = vadd.f32 0.0, %v204
    %v206 = vpop.f32.mrb[0].mxu0
    %207 = vmatprep.mubr.f32.mxu0 0.0
    %208 = vmatmul.mubr.f32.gmra.mrb[0].mxu0 %v82
    %v209 = vpop.f32.mrb[0].mxu0
    %v210 = vadd.f32 0.0, %v209
    %v211 = vpop.f32.mrb[0].mxu0
    %212 = vmatprep.mubr.f32.mxu0 0.0
    %213 = vmatmul.mubr.f32.gmra.mrb[0].mxu0 %v85
    %v214 = vpop.f32.mrb[0].mxu0
    %v215 = vadd.f32 0.0, %v214
    %v216 = vpop.f32.mrb[0].mxu0
    %217 = vmatprep.mubr.f32.mxu0 0.0
    %218 = vmatmul.mubr.f32.gmra.mrb[0].mxu0 %v88
    %v219 = vpop.f32.mrb[0].mxu0
    %v220 = vadd.f32 0.0, %v219
    %v221 = vpop.f32.mrb[0].mxu0
    %222 = vmatprep.mubr.f32.mxu0 0.0
    %223 = vmatmul.mubr.f32.gmra.mrb[0].mxu0 %v91
    %v224 = vpop.f32.mrb[0].mxu0
    %v225 = vadd.f32 0.0, %v224
    %v226 = vpop.f32.mrb[0].mxu0
    %227 = vmatprep.mubr.f32.mxu0 0.0
    %228 = vmatmul.mubr.f32.gmra.mrb[0].mxu0 %v94
    %v229 = vpop.f32.mrb[0].mxu0
    %v230 = vadd.f32 0.0, %v229
    %v231 = vpop.f32.mrb[0].mxu0
    %232 = vmatprep.mubr.f32.mxu0 0.0
    %233 = vmatmul.mubr.f32.gmra.mrb[0].mxu0 %v97
    %v234 = vpop.f32.mrb[0].mxu0
    %v235 = vadd.f32 0.0, %v234
    %v236 = vpop.f32.mrb[0].mxu0
    %237 = vmatprep.mubr.f32.mxu0 0.0
    %238 = vmatmul.mubr.f32.gmra.mrb[0].mxu0 %v100
    %v239 = vpop.f32.mrb[0].mxu0
    %v240 = vadd.f32 0.0, %v239
    %v241 = vpop.f32.mrb[0].mxu0
    %242 = vmatprep.mubr.f32.mxu0 0.0
    %243 = vmatmul.mubr.f32.gmra.mrb[0].mxu0 %v103
    %v244 = vpop.f32.mrb[0].mxu0
    %v245 = vadd.f32 0.0, %v244
    %v246 = vpop.f32.mrb[0].mxu0
    %247 = vmatprep.mubr.f32.mxu0 0.0
    %248 = vmatmul.mubr.f32.gmra.mrb[0].mxu0 %v106
    %v249 = vpop.f32.mrb[0].mxu0
    %v250 = vadd.f32 0.0, %v249
    %v251 = vpop.f32.mrb[0].mxu0
    %252 = vdwg.mxu0
    %v253 = vld [vmem:[%s4] sm:$0xff]
    %vm254 = vcmask 64512
    %v256 = vsel %vm254, %v175, 0
    %v259 = vsel %vm254, %v180, 0
    %v262 = vsel %vm254, %v185, 0
    %v265 = vsel %vm254, %v190, 0
    %v268 = vsel %vm254, %v195, 0
    %v271 = vsel %vm254, %v200, 0
    %v274 = vsel %vm254, %v205, 0
    %v277 = vsel %vm254, %v210, 0
    %v280 = vsel %vm254, %v215, 0
    %v283 = vsel %vm254, %v220, 0
    %v286 = vsel %vm254, %v225, 0
    %v289 = vsel %vm254, %v230, 0
    %v292 = vsel %vm254, %v235, 0
    %v295 = vsel %vm254, %v240, 0
    %v298 = vsel %vm254, %v245, 0
    %v301 = vsel %vm254, %v250, 0
    %303 = vmatprep.subr.mxu0 0.0
    %304 = vmatpush1.msra.mxu0 %v253
    %305 = vmatprep.subr.mxu0 0.0
    %306 = vmatpush1.msra.mxu0 0.0
    %307 = vmatprep.subr.mxu0 0.0
    %308 = vmatpush1.msra.mxu0 0.0
    %309 = vmatprep.subr.mxu0 0.0
    %310 = vmatpush1.msra.mxu0 0.0
    %311 = vmatprep.subr.mxu0 0.0
    %312 = vmatpush1.msra.mxu0 0.0
    %313 = vmatprep.subr.mxu0 0.0
    %314 = vmatpush1.msra.mxu0 0.0
    %315 = vmatprep.subr.mxu0 0.0
    %316 = vmatpush1.msra.mxu0 0.0
    %317 = vmatprep.subr.mxu0 0.0
    %318 = vmatpush1.msra.mxu0 0.0
    %319 = vmatprep.subr.mxu0 0.0
    %320 = vmatpush1.msra.mxu0 0.0
    %321 = vmatprep.subr.mxu0 0.0
    %322 = vmatpush1.msra.mxu0 0.0
    %323 = vmatprep.subr.mxu0 0.0
    %324 = vmatpush1.msra.mxu0 0.0
    %325 = vmatprep.subr.mxu0 0.0
    %326 = vmatpush1.msra.mxu0 0.0
    %327 = vmatprep.subr.mxu0 0.0
    %328 = vmatpush1.msra.mxu0 0.0
    %329 = vmatprep.subr.mxu0 0.0
    %330 = vmatpush1.msra.mxu0 0.0
    %331 = vmatprep.subr.mxu0 0.0
    %332 = vmatpush1.msra.mxu0 0.0
    %333 = vmatprep.subr.mxu0 0.0
    %334 = vmatpush1.msra.mxu0 0.0
    %335 = vmatprep.subr.mxu0 0.0
    %336 = vmatpush1.msra.mxu0 0.0
    %337 = vmatprep.subr.mxu0 0.0
    %338 = vmatpush1.msra.mxu0 0.0
    %339 = vmatprep.subr.mxu0 0.0
    %340 = vmatpush1.msra.mxu0 0.0
    %341 = vmatprep.subr.mxu0 0.0
    %342 = vmatpush1.msra.mxu0 0.0
    %343 = vmatprep.subr.mxu0 0.0
    %344 = vmatpush1.msra.mxu0 0.0
    %345 = vmatprep.subr.mxu0 0.0
    %346 = vmatpush1.msra.mxu0 0.0
    %347 = vmatprep.subr.mxu0 0.0
    %348 = vmatpush1.msra.mxu0 0.0
    %349 = vmatprep.subr.mxu0 0.0
    %350 = vmatpush1.msra.mxu0 0.0
    %351 = vmatprep.subr.mxu0 0.0
    %352 = vmatpush1.msra.mxu0 0.0
    %353 = vmatprep.subr.mxu0 0.0
    %354 = vmatpush1.msra.mxu0 0.0
    %355 = vmatprep.subr.mxu0 0.0
    %356 = vmatpush1.msra.mxu0 0.0
    %357 = vmatprep.subr.mxu0 0.0
    %358 = vmatpush1.msra.mxu0 0.0
    %359 = vmatprep.subr.mxu0 0.0
    %360 = vmatpush1.msra.mxu0 0.0
    %361 = vmatprep.subr.mxu0 0.0
    %362 = vmatpush1.msra.mxu0 0.0
    %363 = vmatprep.subr.mxu0 0.0
    %364 = vmatpush1.msra.mxu0 0.0
    %365 = vmatprep.subr.mxu0 0.0
    %366 = vmatpush1.msra.mxu0 0.0
    %367 = vmatprep.mubr.f32.mxu0 0.0
    %368 = vmatmul.mubr.f32.gmra.mrb[0].mxu0 %v256
    %v369 = vpop.f32.mrb[0].mxu0
    %v370 = vadd.f32 0.0, %v369
    %v371 = vpop.f32.mrb[0].mxu0
    %372 = vmatprep.mubr.f32.mxu0 0.0
    %373 = vmatmul.mubr.f32.gmra.mrb[0].mxu0 %v259
    %v374 = vpop.f32.mrb[0].mxu0
    %v375 = vadd.f32 0.0, %v374
    %v376 = vpop.f32.mrb[0].mxu0
    %377 = vmatprep.mubr.f32.mxu0 0.0
    %378 = vmatmul.mubr.f32.gmra.mrb[0].mxu0 %v262
    %v379 = vpop.f32.mrb[0].mxu0
    %v380 = vadd.f32 0.0, %v379
    %v381 = vpop.f32.mrb[0].mxu0
    %382 = vmatprep.mubr.f32.mxu0 0.0
    %383 = vmatmul.mubr.f32.gmra.mrb[0].mxu0 %v265
    %v384 = vpop.f32.mrb[0].mxu0
    %v385 = vadd.f32 0.0, %v384
    %v386 = vpop.f32.mrb[0].mxu0
    %387 = vmatprep.mubr.f32.mxu0 0.0
    %388 = vmatmul.mubr.f32.gmra.mrb[0].mxu0 %v268
    %v389 = vpop.f32.mrb[0].mxu0
    %v390 = vadd.f32 0.0, %v389
    %v391 = vpop.f32.mrb[0].mxu0
    %392 = vmatprep.mubr.f32.mxu0 0.0
    %393 = vmatmul.mubr.f32.gmra.mrb[0].mxu0 %v271
    %v394 = vpop.f32.mrb[0].mxu0
    %v395 = vadd.f32 0.0, %v394
    %v396 = vpop.f32.mrb[0].mxu0
    %397 = vmatprep.mubr.f32.mxu0 0.0
    %398 = vmatmul.mubr.f32.gmra.mrb[0].mxu0 %v274
    %v399 = vpop.f32.mrb[0].mxu0
    %v400 = vadd.f32 0.0, %v399
    %v401 = vpop.f32.mrb[0].mxu0
    %402 = vmatprep.mubr.f32.mxu0 0.0
    %403 = vmatmul.mubr.f32.gmra.mrb[0].mxu0 %v277
    %v404 = vpop.f32.mrb[0].mxu0
    %v405 = vadd.f32 0.0, %v404
    %v406 = vpop.f32.mrb[0].mxu0
    %407 = vmatprep.mubr.f32.mxu0 0.0
    %408 = vmatmul.mubr.f32.gmra.mrb[0].mxu0 %v280
    %v409 = vpop.f32.mrb[0].mxu0
    %v410 = vadd.f32 0.0, %v409
    %v411 = vpop.f32.mrb[0].mxu0
    %412 = vmatprep.mubr.f32.mxu0 0.0
    %413 = vmatmul.mubr.f32.gmra.mrb[0].mxu0 %v283
    %v414 = vpop.f32.mrb[0].mxu0
    %v415 = vadd.f32 0.0, %v414
    %v416 = vpop.f32.mrb[0].mxu0
    %417 = vmatprep.mubr.f32.mxu0 0.0
    %418 = vmatmul.mubr.f32.gmra.mrb[0].mxu0 %v286
    %v419 = vpop.f32.mrb[0].mxu0
    %v420 = vadd.f32 0.0, %v419
    %v421 = vpop.f32.mrb[0].mxu0
    %422 = vmatprep.mubr.f32.mxu0 0.0
    %423 = vmatmul.mubr.f32.gmra.mrb[0].mxu0 %v289
    %v424 = vpop.f32.mrb[0].mxu0
    %v425 = vadd.f32 0.0, %v424
    %v426 = vpop.f32.mrb[0].mxu0
    %427 = vmatprep.mubr.f32.mxu0 0.0
    %428 = vmatmul.mubr.f32.gmra.mrb[0].mxu0 %v292
    %v429 = vpop.f32.mrb[0].mxu0
    %v430 = vadd.f32 0.0, %v429
    %v431 = vpop.f32.mrb[0].mxu0
    %432 = vmatprep.mubr.f32.mxu0 0.0
    %433 = vmatmul.mubr.f32.gmra.mrb[0].mxu0 %v295
    %v434 = vpop.f32.mrb[0].mxu0
    %v435 = vadd.f32 0.0, %v434
    %v436 = vpop.f32.mrb[0].mxu0
    %437 = vmatprep.mubr.f32.mxu0 0.0
    %438 = vmatmul.mubr.f32.gmra.mrb[0].mxu0 %v298
    %v439 = vpop.f32.mrb[0].mxu0
    %v440 = vadd.f32 0.0, %v439
    %v441 = vpop.f32.mrb[0].mxu0
    %442 = vmatprep.mubr.f32.mxu0 0.0
    %443 = vmatmul.mubr.f32.gmra.mrb[0].mxu0 %v301
    %v444 = vpop.f32.mrb[0].mxu0
    %v445 = vadd.f32 0.0, %v444
    %v446 = vpop.f32.mrb[0].mxu0
    %447 = vdwg.mxu0
    %v448 = vld [vmem:[%s2] sm:$0x1]
    %v450 = vlaneseq
    %v451 = vshrl.u32 %v450, 7
    %v452 = vsub.s32 0, %v451
    %v453 = vrot.slane %v448, %v452
    %455 = vmatprep.subr.mxu0 0.0
    %456 = vmatpush1.msra.mxu0 %v51
    %457 = vmatprep.subr.mxu0 0.0
    %458 = vmatpush1.msra.mxu0 %v52
    %459 = vmatprep.subr.mxu0 0.0
    %460 = vmatpush1.msra.mxu0 %v53
    %461 = vmatprep.subr.mxu0 0.0
    %462 = vmatpush1.msra.mxu0 %v54
    %463 = vmatprep.subr.mxu0 0.0
    %464 = vmatpush1.msra.mxu0 0.0
    %465 = vmatprep.subr.mxu0 0.0
    %466 = vmatpush1.msra.mxu0 0.0
    %467 = vmatprep.subr.mxu0 0.0
    %468 = vmatpush1.msra.mxu0 0.0
    %469 = vmatprep.subr.mxu0 0.0
    %470 = vmatpush1.msra.mxu0 0.0
    %471 = vmatprep.subr.mxu0 0.0
    %472 = vmatpush1.msra.mxu0 0.0
    %473 = vmatprep.subr.mxu0 0.0
    %474 = vmatpush1.msra.mxu0 0.0
    %475 = vmatprep.subr.mxu0 0.0
    %476 = vmatpush1.msra.mxu0 0.0
    %477 = vmatprep.subr.mxu0 0.0
    %478 = vmatpush1.msra.mxu0 0.0
    %479 = vmatprep.subr.mxu0 0.0
    %480 = vmatpush1.msra.mxu0 0.0
    %481 = vmatprep.subr.mxu0 0.0
    %482 = vmatpush1.msra.mxu0 0.0
    %483 = vmatprep.subr.mxu0 0.0
    %484 = vmatpush1.msra.mxu0 0.0
    %485 = vmatprep.subr.mxu0 0.0
    %486 = vmatpush1.msra.mxu0 0.0
    %487 = vmatprep.subr.mxu0 0.0
    %488 = vmatpush1.msra.mxu0 0.0
    %489 = vmatprep.subr.mxu0 0.0
    %490 = vmatpush1.msra.mxu0 0.0
    %491 = vmatprep.subr.mxu0 0.0
    %492 = vmatpush1.msra.mxu0 0.0
    %493 = vmatprep.subr.mxu0 0.0
    %494 = vmatpush1.msra.mxu0 0.0
    %495 = vmatprep.subr.mxu0 0.0
    %496 = vmatpush1.msra.mxu0 0.0
    %497 = vmatprep.subr.mxu0 0.0
    %498 = vmatpush1.msra.mxu0 0.0
    %499 = vmatprep.subr.mxu0 0.0
    %500 = vmatpush1.msra.mxu0 0.0
    %501 = vmatprep.subr.mxu0 0.0
    %502 = vmatpush1.msra.mxu0 0.0
    %503 = vmatprep.subr.mxu0 0.0
    %504 = vmatpush1.msra.mxu0 0.0
    %505 = vmatprep.subr.mxu0 0.0
    %506 = vmatpush1.msra.mxu0 0.0
    %507 = vmatprep.subr.mxu0 0.0
    %508 = vmatpush1.msra.mxu0 0.0
    %509 = vmatprep.subr.mxu0 0.0
    %510 = vmatpush1.msra.mxu0 0.0
    %511 = vmatprep.subr.mxu0 0.0
    %512 = vmatpush1.msra.mxu0 0.0
    %513 = vmatprep.subr.mxu0 0.0
    %514 = vmatpush1.msra.mxu0 0.0
    %515 = vmatprep.subr.mxu0 0.0
    %516 = vmatpush1.msra.mxu0 0.0
    %517 = vmatprep.subr.mxu0 0.0
    %518 = vmatpush1.msra.mxu0 0.0
    %519 = vmatprep.mubr.f32.mxu0 0.0
    %520 = vmatmul.mubr.f32.gmra.mrb[0].mxu0 %v61
    %v521 = vpop.f32.mrb[0].mxu0
    %v522 = vadd.f32 %v453, %v521
    %v523 = vpop.f32.mrb[0].mxu0
    %524 = vmatprep.mubr.f32.mxu0 0.0
    %525 = vmatmul.mubr.f32.gmra.mrb[0].mxu0 %v64
    %v526 = vpop.f32.mrb[0].mxu0
    %v527 = vadd.f32 %v453, %v526
    %v528 = vpop.f32.mrb[0].mxu0
    %529 = vmatprep.mubr.f32.mxu0 0.0
    %530 = vmatmul.mubr.f32.gmra.mrb[0].mxu0 %v67
    %v531 = vpop.f32.mrb[0].mxu0
    %v532 = vadd.f32 %v453, %v531
    %v533 = vpop.f32.mrb[0].mxu0
    %534 = vmatprep.mubr.f32.mxu0 0.0
    %535 = vmatmul.mubr.f32.gmra.mrb[0].mxu0 %v70
    %v536 = vpop.f32.mrb[0].mxu0
    %v537 = vadd.f32 %v453, %v536
    %v538 = vpop.f32.mrb[0].mxu0
    %539 = vmatprep.mubr.f32.mxu0 0.0
    %540 = vmatmul.mubr.f32.gmra.mrb[0].mxu0 %v73
    %v541 = vpop.f32.mrb[0].mxu0
    %v542 = vadd.f32 %v453, %v541
    %v543 = vpop.f32.mrb[0].mxu0
    %544 = vmatprep.mubr.f32.mxu0 0.0
    %545 = vmatmul.mubr.f32.gmra.mrb[0].mxu0 %v76
    %v546 = vpop.f32.mrb[0].mxu0
    %v547 = vadd.f32 %v453, %v546
    %v548 = vpop.f32.mrb[0].mxu0
    %549 = vmatprep.mubr.f32.mxu0 0.0
    %550 = vmatmul.mubr.f32.gmra.mrb[0].mxu0 %v79
    %v551 = vpop.f32.mrb[0].mxu0
    %v552 = vadd.f32 %v453, %v551
    %v553 = vpop.f32.mrb[0].mxu0
    %554 = vmatprep.mubr.f32.mxu0 0.0
    %555 = vmatmul.mubr.f32.gmra.mrb[0].mxu0 %v82
    %v556 = vpop.f32.mrb[0].mxu0
    %v557 = vadd.f32 %v453, %v556
    %v558 = vpop.f32.mrb[0].mxu0
    %559 = vmatprep.mubr.f32.mxu0 0.0
    %560 = vmatmul.mubr.f32.gmra.mrb[0].mxu0 %v85
    %v561 = vpop.f32.mrb[0].mxu0
    %v562 = vadd.f32 %v453, %v561
    %v563 = vpop.f32.mrb[0].mxu0
    %564 = vmatprep.mubr.f32.mxu0 0.0
    %565 = vmatmul.mubr.f32.gmra.mrb[0].mxu0 %v88
    %v566 = vpop.f32.mrb[0].mxu0
    %v567 = vadd.f32 %v453, %v566
    %v568 = vpop.f32.mrb[0].mxu0
    %569 = vmatprep.mubr.f32.mxu0 0.0
    %570 = vmatmul.mubr.f32.gmra.mrb[0].mxu0 %v91
    %v571 = vpop.f32.mrb[0].mxu0
    %v572 = vadd.f32 %v453, %v571
    %v573 = vpop.f32.mrb[0].mxu0
    %574 = vmatprep.mubr.f32.mxu0 0.0
    %575 = vmatmul.mubr.f32.gmra.mrb[0].mxu0 %v94
    %v576 = vpop.f32.mrb[0].mxu0
    %v577 = vadd.f32 %v453, %v576
    %v578 = vpop.f32.mrb[0].mxu0
    %579 = vmatprep.mubr.f32.mxu0 0.0
    %580 = vmatmul.mubr.f32.gmra.mrb[0].mxu0 %v97
    %v581 = vpop.f32.mrb[0].mxu0
    %v582 = vadd.f32 %v453, %v581
    %v583 = vpop.f32.mrb[0].mxu0
    %584 = vmatprep.mubr.f32.mxu0 0.0
    %585 = vmatmul.mubr.f32.gmra.mrb[0].mxu0 %v100
    %v586 = vpop.f32.mrb[0].mxu0
    %v587 = vadd.f32 %v453, %v586
    %v588 = vpop.f32.mrb[0].mxu0
    %589 = vmatprep.mubr.f32.mxu0 0.0
    %590 = vmatmul.mubr.f32.gmra.mrb[0].mxu0 %v103
    %v591 = vpop.f32.mrb[0].mxu0
    %v592 = vadd.f32 %v453, %v591
    %v593 = vpop.f32.mrb[0].mxu0
    %594 = vmatprep.mubr.f32.mxu0 0.0
    %595 = vmatmul.mubr.f32.gmra.mrb[0].mxu0 %v106
    %v596 = vpop.f32.mrb[0].mxu0
    %v597 = vadd.f32 %v453, %v596
    %v598 = vpop.f32.mrb[0].mxu0
    %599 = vdwg.mxu0
    %v600 = vadd.f32 %v522, %v370
    %v601 = vadd.f32 %v527, %v375
    %v602 = vadd.f32 %v532, %v380
    %v603 = vadd.f32 %v537, %v385
    %v604 = vadd.f32 %v542, %v390
    %v605 = vadd.f32 %v547, %v395
    %v606 = vadd.f32 %v552, %v400
    %v607 = vadd.f32 %v557, %v405
    %v608 = vadd.f32 %v562, %v410
    %v609 = vadd.f32 %v567, %v415
    %v610 = vadd.f32 %v572, %v420
    %v611 = vadd.f32 %v577, %v425
    %v612 = vadd.f32 %v582, %v430
    %v613 = vadd.f32 %v587, %v435
    %v614 = vadd.f32 %v592, %v440
    %v615 = vadd.f32 %v597, %v445
    %vm616 = vcmask 785408
    %617 = vst.msk [vmem:[#allocation5] sm:$0xff] %vm616, %v600
    %618 = vst.msk [vmem:[#allocation5 + $0x8] sm:$0xff] %vm616, %v601
    %619 = vst.msk [vmem:[#allocation5 + $0x10] sm:$0xff] %vm616, %v602
    %620 = vst.msk [vmem:[#allocation5 + $0x18] sm:$0xff] %vm616, %v603
    %621 = vst.msk [vmem:[#allocation5 + $0x20] sm:$0xff] %vm616, %v604
    %622 = vst.msk [vmem:[#allocation5 + $0x28] sm:$0xff] %vm616, %v605
    %623 = vst.msk [vmem:[#allocation5 + $0x30] sm:$0xff] %vm616, %v606
    %624 = vst.msk [vmem:[#allocation5 + $0x38] sm:$0xff] %vm616, %v607
    %625 = vst.msk [vmem:[#allocation5 + $0x40] sm:$0xff] %vm616, %v608
    %626 = vst.msk [vmem:[#allocation5 + $0x48] sm:$0xff] %vm616, %v609
    %627 = vst.msk [vmem:[#allocation5 + $0x50] sm:$0xff] %vm616, %v610
    %628 = vst.msk [vmem:[#allocation5 + $0x58] sm:$0xff] %vm616, %v611
    %629 = vst.msk [vmem:[#allocation5 + $0x60] sm:$0xff] %vm616, %v612
    %630 = vst.msk [vmem:[#allocation5 + $0x68] sm:$0xff] %vm616, %v613
    %631 = vst.msk [vmem:[#allocation5 + $0x70] sm:$0xff] %vm616, %v614
    %632 = vst.msk [vmem:[#allocation5 + $0x78] sm:$0xff] %vm616, %v615
    // Predicated region
    $region26: #{lora_qkv_forward.1} parent=1 // pred_check
      _
    $region27: #{lora_qkv_forward.1} parent=1 // pred_check_branch
      %634 = sbr.rel (0) target = $region29
    $region28: #{lora_qkv_forward.1} parent=1 // pred_region
      %s636 = ssub.s32 2048, 2048
      %637 = vsyncadd [#allocation4], %s636
      %s638 = sshll.u32 [#allocation5], 4
      %s639 = int_to_ptr.vmem [resolvable:$true] %s638
      %644 = dma.vmem_to_hbm [thread:$0]  %s639, 2048, %s5, [#allocation4], 128, 128, 8
    $region29: #{lora_qkv_forward.1} parent=1 // pred_fallthru
      _
    // Predicated region
    $region30: #{lora_qkv_forward.1} parent=1 // pred_check
      _
    $region31: #{lora_qkv_forward.1} parent=1 // pred_check_branch
      %646 = sbr.rel (0) target = $region33
    $region32: #{lora_qkv_forward.1} parent=1 // pred_region
      %647 = dma.done [#allocation4], 2048
    $region33: #{lora_qkv_forward.1} parent=1 // pred_fallthru
      _
    %648 = vsyncpa [#allocation3], 1
    %649 = vsyncpa [#allocation4], 1

</llo_original>
